<compile_context>
chip_gen: v5e
topology: v5e:2x2
jax: 0.10.0
libtpu: 0.0.40
codegen_flags: <defaults>
</compile_context>

<pallas_src>
import jax
import jax.numpy as jnp
from jax.experimental import pallas as pl
from jax.experimental.pallas import tpu as pltpu

DIMS = [16, 64, 128, 256, 128, 64, 3]
OUT_PAD = 128   # lane-dense padded output width (real logits = first 3 cols)
TB_MAX = 512    # max batch tile (multiple of 256-wide MXU; fits VMEM easily)


def mlp_kernel(x_ref,
               w1_ref, b1_ref,
               w2_ref, b2_ref,
               w3_ref, b3_ref,
               w4_ref, b4_ref,
               w5_ref, b5_ref,
               w6_ref, b6_ref,
               o_ref):
    # Activations stay f32 on the VPU; each matmul feeds the MXU bf16 operands
    # and accumulates in f32.
    def dense_relu(h, w_ref, b_ref):
        y = jnp.dot(h.astype(jnp.bfloat16), w_ref[...],
                    preferred_element_type=jnp.float32)
        y = y + b_ref[...]              # (1, out) broadcasts over batch rows
        return jnp.maximum(y, 0.0)      # ReLU after EVERY layer (incl. last)

    h = x_ref[...]
    # Fully unrolled (no Python loop over a ref list) so nothing (e.g. bias
    # broadcasts) gets re-emitted per iteration and the LLO scheduler sees the
    # whole chain.
    h = dense_relu(h, w1_ref, b1_ref)
    h = dense_relu(h, w2_ref, b2_ref)
    h = dense_relu(h, w3_ref, b3_ref)
    h = dense_relu(h, w4_ref, b4_ref)
    h = dense_relu(h, w5_ref, b5_ref)
    h = dense_relu(h, w6_ref, b6_ref)   # last layer padded to 128 lanes

    o_ref[...] = h.astype(o_ref.dtype)


def mlp_forward(x, params):
    """x: (B, 16) f32.  params: list of (W(in,out) bf16, b(1,out) f32) pairs;
    the last layer's W/b are zero-padded to OUT_PAD columns."""
    B, in_dim = x.shape

    # Batch tile: big for throughput, but never larger than the (sublane-
    # aligned) batch so tiny batches don't burn MXU cycles on pure padding.
    b_aligned = pl.cdiv(B, 8) * 8
    tb = min(TB_MAX, b_aligned)
    n_tiles = pl.cdiv(B, tb)
    B_pad = n_tiles * tb
    if B_pad != B:
        x = jnp.pad(x, ((0, B_pad - B), (0, 0)))

    flat = []
    for w, b in params:
        flat.extend([w, b])

    in_specs = [pl.BlockSpec((tb, in_dim), lambda i: (i, 0))]
    for a in flat:
        # Constant index_map -> weights/biases DMA'd once, VMEM-resident
        # across every grid step.
        in_specs.append(pl.BlockSpec(a.shape, lambda i: (0, 0)))

    out_pad = pl.pallas_call(
        mlp_kernel,
        out_shape=jax.ShapeDtypeStruct((B_pad, OUT_PAD), jnp.float32),
        grid=(n_tiles,),
        in_specs=in_specs,
        out_specs=pl.BlockSpec((tb, OUT_PAD), lambda i: (i, 0)),
        compiler_params=pltpu.CompilerParams(
            dimension_semantics=("parallel",)),  # shard batch tiles across TCs
    )(x, *flat)

    return out_pad[:B, :DIMS[-1]]


def init_params(key):
    """PyTorch-style init. Linear(in,out) stores W:(out,in); we keep W^T:(in,out)."""
    params = []
    for i in range(len(DIMS) - 1):
        key, kw, kb = jax.random.split(key, 3)
        bound = 1.0 / float(DIMS[i]) ** 0.5
        w = jax.random.uniform(kw, (DIMS[i], DIMS[i + 1]),
                               jnp.float32, -bound, bound)
        b = jax.random.uniform(kb, (1, DIMS[i + 1]),
                               jnp.float32, -bound, bound)
        params.append((w, b))
    return params


def pad_and_cast(params):
    """Cast weights to bf16 for the MXU; zero-pad the last layer to OUT_PAD
    columns (zero pad + ReLU => sliced-back 3 columns are unchanged)."""
    out = []
    for idx, (w, b) in enumerate(params):
        if idx == len(params) - 1:
            w = jnp.pad(w, ((0, 0), (0, OUT_PAD - w.shape[1])))
            b = jnp.pad(b, ((0, 0), (0, OUT_PAD - b.shape[1])))
        out.append((w.astype(jnp.bfloat16), b))
    return out


def reference_forward(x, params):
    """Pure-JAX reference with the exact same precision recipe as the kernel
    (bf16 operands, f32 accumulation, ReLU after every layer)."""
    h = x
    for w, b in params:
        y = jnp.dot(h.astype(jnp.bfloat16), w,
                    preferred_element_type=jnp.float32) + b
        h = jnp.maximum(y, 0.0)
    return h


if __name__ == "__main__":
    key = jax.random.PRNGKey(0)
    key, kx = jax.random.split(key)

    B = 8  # small example batch
    x = jax.random.normal(kx, (B, DIMS[0]), jnp.float32)
    params = pad_and_cast(init_params(key))

    out = jax.block_until_ready(mlp_forward(x, params))

    ref = reference_forward(x, params)[:, :DIMS[-1]]
    assert out.shape == (B, DIMS[-1]), out.shape
    assert jnp.allclose(out, ref, atol=1e-3, rtol=1e-3), "mismatch vs reference"

    print("KERNEL_OK")
</pallas_src>

<mosaic_0001>
module attributes {stable_mosaic.version = 11 : i64} {
  func.func @mlp_kernel(%arg0: i32, %arg1: memref<8x16xf32, #tpu.memory_space<vmem>>, %arg2: memref<16x64xbf16, #tpu.memory_space<vmem>>, %arg3: memref<1x64xf32, #tpu.memory_space<vmem>>, %arg4: memref<64x128xbf16, #tpu.memory_space<vmem>>, %arg5: memref<1x128xf32, #tpu.memory_space<vmem>>, %arg6: memref<128x256xbf16, #tpu.memory_space<vmem>>, %arg7: memref<1x256xf32, #tpu.memory_space<vmem>>, %arg8: memref<256x128xbf16, #tpu.memory_space<vmem>>, %arg9: memref<1x128xf32, #tpu.memory_space<vmem>>, %arg10: memref<128x64xbf16, #tpu.memory_space<vmem>>, %arg11: memref<1x64xf32, #tpu.memory_space<vmem>>, %arg12: memref<64x128xbf16, #tpu.memory_space<vmem>>, %arg13: memref<1x128xf32, #tpu.memory_space<vmem>>, %arg14: memref<8x128xf32, #tpu.memory_space<vmem>>) attributes {dimension_semantics = [#tpu.dimension_semantics<parallel>], iteration_bounds = array<i64: 1>, scalar_prefetch = 0 : i64, scratch_operands = 0 : i64, tpu.core_type = #tpu.core_type<tc>, window_params = [{transform_indices = @transform_0, window_bounds = array<i64: 8, 16>}, {pipeline_mode = #tpu.pipeline_mode<synchronous>, transform_indices = @transform_1, window_bounds = array<i64: 16, 64>}, {pipeline_mode = #tpu.pipeline_mode<synchronous>, transform_indices = @transform_2, window_bounds = array<i64: 1, 64>}, {pipeline_mode = #tpu.pipeline_mode<synchronous>, transform_indices = @transform_3, window_bounds = array<i64: 64, 128>}, {pipeline_mode = #tpu.pipeline_mode<synchronous>, transform_indices = @transform_4, window_bounds = array<i64: 1, 128>}, {pipeline_mode = #tpu.pipeline_mode<synchronous>, transform_indices = @transform_5, window_bounds = array<i64: 128, 256>}, {pipeline_mode = #tpu.pipeline_mode<synchronous>, transform_indices = @transform_6, window_bounds = array<i64: 1, 256>}, {pipeline_mode = #tpu.pipeline_mode<synchronous>, transform_indices = @transform_7, window_bounds = array<i64: 256, 128>}, {pipeline_mode = #tpu.pipeline_mode<synchronous>, transform_indices = @transform_8, window_bounds = array<i64: 1, 128>}, {pipeline_mode = #tpu.pipeline_mode<synchronous>, transform_indices = @transform_9, window_bounds = array<i64: 128, 64>}, {pipeline_mode = #tpu.pipeline_mode<synchronous>, transform_indices = @transform_10, window_bounds = array<i64: 1, 64>}, {pipeline_mode = #tpu.pipeline_mode<synchronous>, transform_indices = @transform_11, window_bounds = array<i64: 64, 128>}, {pipeline_mode = #tpu.pipeline_mode<synchronous>, transform_indices = @transform_12, window_bounds = array<i64: 1, 128>}, {transform_indices = @transform_13, window_bounds = array<i64: 8, 128>}]} {
    %c0 = arith.constant 0 : index
    %c0_0 = arith.constant 0 : index
    %0 = vector.load %arg1[%c0, %c0_0] : memref<8x16xf32, #tpu.memory_space<vmem>>, vector<8x16xf32>
    %1 = arith.truncf %0 : vector<8x16xf32> to vector<8x16xbf16>
    %c0_1 = arith.constant 0 : index
    %c0_2 = arith.constant 0 : index
    %2 = vector.load %arg2[%c0_1, %c0_2] : memref<16x64xbf16, #tpu.memory_space<vmem>>, vector<16x64xbf16>
    %cst = arith.constant dense<0.000000e+00> : vector<8x64xf32>
    %3 = tpu.matmul %1, %2, %cst {dimension_numbers = #tpu.dot_dimension_numbers<[1], [0], [0], [1], [0, 0, 1, 1], [], []>} : vector<8x16xbf16>, vector<16x64xbf16>, vector<8x64xf32> -> vector<8x64xf32>
    %c0_3 = arith.constant 0 : index
    %c0_4 = arith.constant 0 : index
    %4 = vector.load %arg3[%c0_3, %c0_4] : memref<1x64xf32, #tpu.memory_space<vmem>>, vector<1x64xf32>
    %5 = vector.broadcast %4 : vector<1x64xf32> to vector<8x64xf32>
    %6 = arith.addf %3, %5 : vector<8x64xf32>
    %cst_5 = arith.constant 0.000000e+00 : f32
    %7 = vector.broadcast %cst_5 : f32 to vector<8x64xf32>
    %8 = arith.maximumf %6, %7 : vector<8x64xf32>
    %9 = arith.truncf %8 : vector<8x64xf32> to vector<8x64xbf16>
    %c0_6 = arith.constant 0 : index
    %c0_7 = arith.constant 0 : index
    %10 = vector.load %arg4[%c0_6, %c0_7] : memref<64x128xbf16, #tpu.memory_space<vmem>>, vector<64x128xbf16>
    %cst_8 = arith.constant dense<0.000000e+00> : vector<8x128xf32>
    %11 = tpu.matmul %9, %10, %cst_8 {dimension_numbers = #tpu.dot_dimension_numbers<[1], [0], [0], [1], [0, 0, 1, 1], [], []>} : vector<8x64xbf16>, vector<64x128xbf16>, vector<8x128xf32> -> vector<8x128xf32>
    %c0_9 = arith.constant 0 : index
    %c0_10 = arith.constant 0 : index
    %12 = vector.load %arg5[%c0_9, %c0_10] : memref<1x128xf32, #tpu.memory_space<vmem>>, vector<1x128xf32>
    %13 = vector.broadcast %12 : vector<1x128xf32> to vector<8x128xf32>
    %14 = arith.addf %11, %13 : vector<8x128xf32>
    %cst_11 = arith.constant 0.000000e+00 : f32
    %15 = vector.broadcast %cst_11 : f32 to vector<8x128xf32>
    %16 = arith.maximumf %14, %15 : vector<8x128xf32>
    %17 = arith.truncf %16 : vector<8x128xf32> to vector<8x128xbf16>
    %c0_12 = arith.constant 0 : index
    %c0_13 = arith.constant 0 : index
    %18 = vector.load %arg6[%c0_12, %c0_13] : memref<128x256xbf16, #tpu.memory_space<vmem>>, vector<128x256xbf16>
    %cst_14 = arith.constant dense<0.000000e+00> : vector<8x256xf32>
    %19 = tpu.matmul %17, %18, %cst_14 {dimension_numbers = #tpu.dot_dimension_numbers<[1], [0], [0], [1], [0, 0, 1, 1], [], []>} : vector<8x128xbf16>, vector<128x256xbf16>, vector<8x256xf32> -> vector<8x256xf32>
    %c0_15 = arith.constant 0 : index
    %c0_16 = arith.constant 0 : index
    %20 = vector.load %arg7[%c0_15, %c0_16] : memref<1x256xf32, #tpu.memory_space<vmem>>, vector<1x256xf32>
    %21 = vector.broadcast %20 : vector<1x256xf32> to vector<8x256xf32>
    %22 = arith.addf %19, %21 : vector<8x256xf32>
    %cst_17 = arith.constant 0.000000e+00 : f32
    %23 = vector.broadcast %cst_17 : f32 to vector<8x256xf32>
    %24 = arith.maximumf %22, %23 : vector<8x256xf32>
    %25 = arith.truncf %24 : vector<8x256xf32> to vector<8x256xbf16>
    %c0_18 = arith.constant 0 : index
    %c0_19 = arith.constant 0 : index
    %26 = vector.load %arg8[%c0_18, %c0_19] : memref<256x128xbf16, #tpu.memory_space<vmem>>, vector<256x128xbf16>
    %cst_20 = arith.constant dense<0.000000e+00> : vector<8x128xf32>
    %27 = tpu.matmul %25, %26, %cst_20 {dimension_numbers = #tpu.dot_dimension_numbers<[1], [0], [0], [1], [0, 0, 1, 1], [], []>} : vector<8x256xbf16>, vector<256x128xbf16>, vector<8x128xf32> -> vector<8x128xf32>
    %c0_21 = arith.constant 0 : index
    %c0_22 = arith.constant 0 : index
    %28 = vector.load %arg9[%c0_21, %c0_22] : memref<1x128xf32, #tpu.memory_space<vmem>>, vector<1x128xf32>
    %29 = vector.broadcast %28 : vector<1x128xf32> to vector<8x128xf32>
    %30 = arith.addf %27, %29 : vector<8x128xf32>
    %cst_23 = arith.constant 0.000000e+00 : f32
    %31 = vector.broadcast %cst_23 : f32 to vector<8x128xf32>
    %32 = arith.maximumf %30, %31 : vector<8x128xf32>
    %33 = arith.truncf %32 : vector<8x128xf32> to vector<8x128xbf16>
    %c0_24 = arith.constant 0 : index
    %c0_25 = arith.constant 0 : index
    %34 = vector.load %arg10[%c0_24, %c0_25] : memref<128x64xbf16, #tpu.memory_space<vmem>>, vector<128x64xbf16>
    %cst_26 = arith.constant dense<0.000000e+00> : vector<8x64xf32>
    %35 = tpu.matmul %33, %34, %cst_26 {dimension_numbers = #tpu.dot_dimension_numbers<[1], [0], [0], [1], [0, 0, 1, 1], [], []>} : vector<8x128xbf16>, vector<128x64xbf16>, vector<8x64xf32> -> vector<8x64xf32>
    %c0_27 = arith.constant 0 : index
    %c0_28 = arith.constant 0 : index
    %36 = vector.load %arg11[%c0_27, %c0_28] : memref<1x64xf32, #tpu.memory_space<vmem>>, vector<1x64xf32>
    %37 = vector.broadcast %36 : vector<1x64xf32> to vector<8x64xf32>
    %38 = arith.addf %35, %37 : vector<8x64xf32>
    %cst_29 = arith.constant 0.000000e+00 : f32
    %39 = vector.broadcast %cst_29 : f32 to vector<8x64xf32>
    %40 = arith.maximumf %38, %39 : vector<8x64xf32>
    %41 = arith.truncf %40 : vector<8x64xf32> to vector<8x64xbf16>
    %c0_30 = arith.constant 0 : index
    %c0_31 = arith.constant 0 : index
    %42 = vector.load %arg12[%c0_30, %c0_31] : memref<64x128xbf16, #tpu.memory_space<vmem>>, vector<64x128xbf16>
    %cst_32 = arith.constant dense<0.000000e+00> : vector<8x128xf32>
    %43 = tpu.matmul %41, %42, %cst_32 {dimension_numbers = #tpu.dot_dimension_numbers<[1], [0], [0], [1], [0, 0, 1, 1], [], []>} : vector<8x64xbf16>, vector<64x128xbf16>, vector<8x128xf32> -> vector<8x128xf32>
    %c0_33 = arith.constant 0 : index
    %c0_34 = arith.constant 0 : index
    %44 = vector.load %arg13[%c0_33, %c0_34] : memref<1x128xf32, #tpu.memory_space<vmem>>, vector<1x128xf32>
    %45 = vector.broadcast %44 : vector<1x128xf32> to vector<8x128xf32>
    %46 = arith.addf %43, %45 : vector<8x128xf32>
    %cst_35 = arith.constant 0.000000e+00 : f32
    %47 = vector.broadcast %cst_35 : f32 to vector<8x128xf32>
    %48 = arith.maximumf %46, %47 : vector<8x128xf32>
    %c0_36 = arith.constant 0 : index
    %c0_37 = arith.constant 0 : index
    %49 = vector.load %arg14[%c0_36, %c0_37] : memref<8x128xf32, #tpu.memory_space<vmem>>, vector<8x128xf32>
    tpu.vector_store %arg14[%c0_36, %c0_37], %48 {strides = array<i32>} : memref<8x128xf32, #tpu.memory_space<vmem>>, vector<8x128xf32>,
    return
  }
  func.func @transform_0(%arg0: i32) -> (i32, i32) {
    %c0_i32 = arith.constant 0 : i32
    %c0_i32_0 = arith.constant 0 : i32
    return %arg0, %c0_i32 : i32, i32
  }
  func.func @transform_1(%arg0: i32) -> (i32, i32) {
    %c0_i32 = arith.constant 0 : i32
    %c0_i32_0 = arith.constant 0 : i32
    %c0_i32_1 = arith.constant 0 : i32
    return %c0_i32, %c0_i32_0 : i32, i32
  }
  func.func @transform_2(%arg0: i32) -> (i32, i32) {
    %c0_i32 = arith.constant 0 : i32
    %c0_i32_0 = arith.constant 0 : i32
    %c0_i32_1 = arith.constant 0 : i32
    return %c0_i32, %c0_i32_0 : i32, i32
  }
  func.func @transform_3(%arg0: i32) -> (i32, i32) {
    %c0_i32 = arith.constant 0 : i32
    %c0_i32_0 = arith.constant 0 : i32
    %c0_i32_1 = arith.constant 0 : i32
    return %c0_i32, %c0_i32_0 : i32, i32
  }
  func.func @transform_4(%arg0: i32) -> (i32, i32) {
    %c0_i32 = arith.constant 0 : i32
    %c0_i32_0 = arith.constant 0 : i32
    %c0_i32_1 = arith.constant 0 : i32
    return %c0_i32, %c0_i32_0 : i32, i32
  }
  func.func @transform_5(%arg0: i32) -> (i32, i32) {
    %c0_i32 = arith.constant 0 : i32
    %c0_i32_0 = arith.constant 0 : i32
    %c0_i32_1 = arith.constant 0 : i32
    return %c0_i32, %c0_i32_0 : i32, i32
  }
  func.func @transform_6(%arg0: i32) -> (i32, i32) {
    %c0_i32 = arith.constant 0 : i32
    %c0_i32_0 = arith.constant 0 : i32
    %c0_i32_1 = arith.constant 0 : i32
    return %c0_i32, %c0_i32_0 : i32, i32
  }
  func.func @transform_7(%arg0: i32) -> (i32, i32) {
    %c0_i32 = arith.constant 0 : i32
    %c0_i32_0 = arith.constant 0 : i32
    %c0_i32_1 = arith.constant 0 : i32
    return %c0_i32, %c0_i32_0 : i32, i32
  }
  func.func @transform_8(%arg0: i32) -> (i32, i32) {
    %c0_i32 = arith.constant 0 : i32
    %c0_i32_0 = arith.constant 0 : i32
    %c0_i32_1 = arith.constant 0 : i32
    return %c0_i32, %c0_i32_0 : i32, i32
  }
  func.func @transform_9(%arg0: i32) -> (i32, i32) {
    %c0_i32 = arith.constant 0 : i32
    %c0_i32_0 = arith.constant 0 : i32
    %c0_i32_1 = arith.constant 0 : i32
    return %c0_i32, %c0_i32_0 : i32, i32
  }
  func.func @transform_10(%arg0: i32) -> (i32, i32) {
    %c0_i32 = arith.constant 0 : i32
    %c0_i32_0 = arith.constant 0 : i32
    %c0_i32_1 = arith.constant 0 : i32
    return %c0_i32, %c0_i32_0 : i32, i32
  }
  func.func @transform_11(%arg0: i32) -> (i32, i32) {
    %c0_i32 = arith.constant 0 : i32
    %c0_i32_0 = arith.constant 0 : i32
    %c0_i32_1 = arith.constant 0 : i32
    return %c0_i32, %c0_i32_0 : i32, i32
  }
  func.func @transform_12(%arg0: i32) -> (i32, i32) {
    %c0_i32 = arith.constant 0 : i32
    %c0_i32_0 = arith.constant 0 : i32
    %c0_i32_1 = arith.constant 0 : i32
    return %c0_i32, %c0_i32_0 : i32, i32
  }
  func.func @transform_13(%arg0: i32) -> (i32, i32) {
    %c0_i32 = arith.constant 0 : i32
    %c0_i32_0 = arith.constant 0 : i32
    return %arg0, %c0_i32 : i32, i32
  }
}

</mosaic_0001>

<llo_original>
// kernel: tpu_custom_call.1
$region0: #{tpu_custom_call.1}
  #allocation0 [shape = 'u32[]', space=smem, size = 0x4, offset = 0x4, fixed_abs, tag = 'smem constant byte address 0x4 - core index']
  #allocation1 [shape = 'u32[72,128]{1,0:T(1,128)}', space=vmem, size = 0x9000, scoped, tag = 'internal scratch']
  %s0 = inlined_call_operand.vmem [shape: f32[8,16], index: 0, kind: input, shape index: {}]
  %s1 = inlined_call_operand.vmem [shape: bf16[16,64], index: 1, kind: input, shape index: {}]
  %s2 = inlined_call_operand.vmem [shape: f32[1,64], index: 2, kind: input, shape index: {}]
  %s3 = inlined_call_operand.vmem [shape: bf16[64,128], index: 3, kind: input, shape index: {}]
  %s4 = inlined_call_operand.vmem [shape: f32[1,128], index: 4, kind: input, shape index: {}]
  %s5 = inlined_call_operand.hbm [shape: bf16[128,256], index: 5, kind: input, shape index: {}]
  %s6 = inlined_call_operand.vmem [shape: f32[1,256], index: 6, kind: input, shape index: {}]
  %s7 = inlined_call_operand.hbm [shape: bf16[256,128], index: 7, kind: input, shape index: {}]
  %s8 = inlined_call_operand.vmem [shape: f32[1,128], index: 8, kind: input, shape index: {}]
  %s9 = inlined_call_operand.vmem [shape: bf16[128,64], index: 9, kind: input, shape index: {}]
  %s10 = inlined_call_operand.vmem [shape: f32[1,64], index: 10, kind: input, shape index: {}]
  %s11 = inlined_call_operand.vmem [shape: bf16[64,128], index: 11, kind: input, shape index: {}]
  %s12 = inlined_call_operand.vmem [shape: f32[1,128], index: 12, kind: input, shape index: {}]
  %s13 = inlined_call_operand.hbm [shape: f32[8,128], index: 13, kind: output, shape index: {}]
  %s14 = sld [smem:[#allocation0]]
  $region70: #{tpu_custom_call.1} parent=0
    _
  %s16 = ssub.s32 1, %s14
  %s17 = scalar_select 0, %s16, %s14
  $region1: #{tpu_custom_call.1} parent=0
    #allocation2 [shape = 'u8[65536]{0}', space=vmem, size = 0x10000, scoped, tag = 'input window, operand 5, single buffered']
    #allocation3 [shape = 's32[1]{0}', space=sflag, size = 0x4, scoped, tag = 'scoped memory for tpu_custom_call.1']
    #allocation4 [shape = 's32[1]{0}', space=sflag, size = 0x4, scoped, tag = 'scoped memory for tpu_custom_call.1']
    #allocation5 [shape = 'u8[65536]{0}', space=vmem, size = 0x10000, scoped, tag = 'input window, operand 7, single buffered']
    #allocation6 [shape = 's32[1]{0}', space=sflag, size = 0x4, scoped, tag = 'scoped memory for tpu_custom_call.1']
    #allocation7 [shape = 'u8[4096]{0}', space=vmem, size = 0x1000, scoped, tag = 'output window, operand 0, single buffered']
    %18 = vsyncpa [#allocation3], 0
    %19 = vsyncpa [#allocation6], 0
    %20 = vsyncpa [#allocation4], 0
    // Predicated region
    $region2: #{tpu_custom_call.1} parent=1 // pred_check
      _
    $region3: #{tpu_custom_call.1} parent=1 // pred_check_branch
      %22 = sbr.rel (0) target = $region5
    $region4: #{tpu_custom_call.1} parent=1 // pred_region
      _
    $region5: #{tpu_custom_call.1} parent=1 // pred_fallthru
      _
    // Predicated region
    $region6: #{tpu_custom_call.1} parent=1 // pred_check
      _
    $region7: #{tpu_custom_call.1} parent=1 // pred_check_branch
      %24 = sbr.rel (0) target = $region9
    $region8: #{tpu_custom_call.1} parent=1 // pred_region
      _
    $region9: #{tpu_custom_call.1} parent=1 // pred_fallthru
      _
    // Predicated region
    $region10: #{tpu_custom_call.1} parent=1 // pred_check
      _
    $region11: #{tpu_custom_call.1} parent=1 // pred_check_branch
      %26 = sbr.rel (0) target = $region13
    $region12: #{tpu_custom_call.1} parent=1 // pred_region
      _
    $region13: #{tpu_custom_call.1} parent=1 // pred_fallthru
      _
    // Predicated region
    $region14: #{tpu_custom_call.1} parent=1 // pred_check
      _
    $region15: #{tpu_custom_call.1} parent=1 // pred_check_branch
      %28 = sbr.rel (0) target = $region17
    $region16: #{tpu_custom_call.1} parent=1 // pred_region
      _
    $region17: #{tpu_custom_call.1} parent=1 // pred_fallthru
      _
    // Predicated region
    $region18: #{tpu_custom_call.1} parent=1 // pred_check
      _
    $region19: #{tpu_custom_call.1} parent=1 // pred_check_branch
      %30 = sbr.rel (0) target = $region21
    $region20: #{tpu_custom_call.1} parent=1 // pred_region
      _
    $region21: #{tpu_custom_call.1} parent=1 // pred_fallthru
      _
    // Predicated region
    $region22: #{tpu_custom_call.1} parent=1 // pred_check
      _
    $region23: #{tpu_custom_call.1} parent=1 // pred_check_branch
      %32 = sbr.rel (0) target = $region25
    $region24: #{tpu_custom_call.1} parent=1 // pred_region
      %34 = vsyncadd [#allocation3], 0
      %s35 = sshll.u32 %s5, 4
      %s36 = int_to_ptr.hbm [resolvable:$true] %s35
      %s37 = sshll.u32 [#allocation2], 4
      %s38 = int_to_ptr.vmem [resolvable:$true] %s37
      %43 = dma.hbm_to_vmem [thread:$0]  %s36, 2048, %s38, [#allocation3], 128, 128, 8
    $region25: #{tpu_custom_call.1} parent=1 // pred_fallthru
      _
    // Predicated region
    $region26: #{tpu_custom_call.1} parent=1 // pred_check
      _
    $region27: #{tpu_custom_call.1} parent=1 // pred_check_branch
      %45 = sbr.rel (0) target = $region29
    $region28: #{tpu_custom_call.1} parent=1 // pred_region
      _
    $region29: #{tpu_custom_call.1} parent=1 // pred_fallthru
      _
    // Predicated region
    $region30: #{tpu_custom_call.1} parent=1 // pred_check
      _
    $region31: #{tpu_custom_call.1} parent=1 // pred_check_branch
      %47 = sbr.rel (0) target = $region33
    $region32: #{tpu_custom_call.1} parent=1 // pred_region
      %49 = vsyncadd [#allocation6], 0
      %s50 = sshll.u32 %s7, 4
      %s51 = int_to_ptr.hbm [resolvable:$true] %s50
      %s52 = sshll.u32 [#allocation5], 4
      %s53 = int_to_ptr.vmem [resolvable:$true] %s52
      %58 = dma.hbm_to_vmem [thread:$0]  %s51, 2048, %s53, [#allocation6], 64, 64, 4
    $region33: #{tpu_custom_call.1} parent=1 // pred_fallthru
      _
    // Predicated region
    $region34: #{tpu_custom_call.1} parent=1 // pred_check
      _
    $region35: #{tpu_custom_call.1} parent=1 // pred_check_branch
      %60 = sbr.rel (0) target = $region37
    $region36: #{tpu_custom_call.1} parent=1 // pred_region
      _
    $region37: #{tpu_custom_call.1} parent=1 // pred_fallthru
      _
    // Predicated region
    $region38: #{tpu_custom_call.1} parent=1 // pred_check
      _
    $region39: #{tpu_custom_call.1} parent=1 // pred_check_branch
      %62 = sbr.rel (0) target = $region41
    $region40: #{tpu_custom_call.1} parent=1 // pred_region
      _
    $region41: #{tpu_custom_call.1} parent=1 // pred_fallthru
      _
    // Predicated region
    $region42: #{tpu_custom_call.1} parent=1 // pred_check
      _
    $region43: #{tpu_custom_call.1} parent=1 // pred_check_branch
      %64 = sbr.rel (0) target = $region45
    $region44: #{tpu_custom_call.1} parent=1 // pred_region
      _
    $region45: #{tpu_custom_call.1} parent=1 // pred_fallthru
      _
    // Predicated region
    $region46: #{tpu_custom_call.1} parent=1 // pred_check
      _
    $region47: #{tpu_custom_call.1} parent=1 // pred_check_branch
      %66 = sbr.rel (0) target = $region49
    $region48: #{tpu_custom_call.1} parent=1 // pred_region
      _
    $region49: #{tpu_custom_call.1} parent=1 // pred_fallthru
      _
    // Predicated region
    $region50: #{tpu_custom_call.1} parent=1 // pred_check
      _
    $region51: #{tpu_custom_call.1} parent=1 // pred_check_branch
      %68 = sbr.rel (0) target = $region53
    $region52: #{tpu_custom_call.1} parent=1 // pred_region
      _
    $region53: #{tpu_custom_call.1} parent=1 // pred_fallthru
      _
    // Predicated region
    $region54: #{tpu_custom_call.1} parent=1 // pred_check
      _
    $region55: #{tpu_custom_call.1} parent=1 // pred_check_branch
      %70 = sbr.rel (0) target = $region57
    $region56: #{tpu_custom_call.1} parent=1 // pred_region
      %72 = dma.done [#allocation3], 2048
    $region57: #{tpu_custom_call.1} parent=1 // pred_fallthru
      _
    // Predicated region
    $region58: #{tpu_custom_call.1} parent=1 // pred_check
      _
    $region59: #{tpu_custom_call.1} parent=1 // pred_check_branch
      %74 = sbr.rel (0) target = $region61
    $region60: #{tpu_custom_call.1} parent=1 // pred_region
      %76 = dma.done [#allocation6], 2048
    $region61: #{tpu_custom_call.1} parent=1 // pred_fallthru
      _
    %v78 = vld [vmem:[%s0] sm:$0xff]
    %v79 = vpack.c.bf16 %v78, %v78
    %v80 = vld [vmem:[%s1] sm:$0xf]
    %v81 = vld [vmem:[%s1 + $0x4] sm:$0xf]
    %v82 = vld [vmem:[%s2] sm:$0x1]
    %v84 = vperm.slane %v82, 0
    %v88 = vunpack.c.l.b16 %v80
    %v89 = vunpack.c.l.b16 %v81
    %v90 = vpack.c.b16 %v89, %v88
    %vm92 = vcmask 130048
    %v94 = vsel %vm92, %v79, 0
    %96 = vmatpush.bf16.msra.mxu0 0
    %97 = vmatpush.bf16.msra.mxu0 0
    %98 = vmatpush.bf16.msra.mxu0 0
    %99 = vmatpush.bf16.msra.mxu0 0
    %100 = vmatpush.bf16.msra.mxu0 0
    %101 = vmatpush.bf16.msra.mxu0 0
    %102 = vmatpush.bf16.msra.mxu0 0
    %103 = vmatpush.bf16.msra.mxu0 %v90
    %104 = vmatmul.bf16.gmra.mxu0 %v94
    %v105 = vpop.f32.mrf.mxu0
    %v106 = vadd.f32 %v84, %v105
    %v107 = vpop.f32.mrf.mxu0
    %108 = vdwg.mxu0
    %v109 = vmax.f32 %v106, 0.0
    %v110 = vpack.c.bf16 %v109, %v109
    %v111 = vld [vmem:[%s3] sm:$0xf]
    %v112 = vld [vmem:[%s3 + $0x4] sm:$0xf]
    %v113 = vld [vmem:[%s3 + $0x8] sm:$0xf]
    %v114 = vld [vmem:[%s3 + $0xc] sm:$0xf]
    %v115 = vld [vmem:[%s3 + $0x10] sm:$0xf]
    %v116 = vld [vmem:[%s3 + $0x14] sm:$0xf]
    %v117 = vld [vmem:[%s3 + $0x18] sm:$0xf]
    %v118 = vld [vmem:[%s3 + $0x1c] sm:$0xf]
    %v119 = vld [vmem:[%s4] sm:$0x1]
    %v121 = vperm.slane %v119, 0
    %v131 = vunpack.c.l.b16 %v111
    %v132 = vunpack.c.l.b16 %v112
    %v133 = vunpack.c.l.b16 %v113
    %v134 = vunpack.c.l.b16 %v114
    %v135 = vunpack.c.l.b16 %v115
    %v136 = vunpack.c.l.b16 %v116
    %v137 = vunpack.c.l.b16 %v117
    %v138 = vunpack.c.l.b16 %v118
    %v139 = vpack.c.b16 %v132, %v131
    %v140 = vpack.c.b16 %v134, %v133
    %v141 = vpack.c.b16 %v136, %v135
    %v142 = vpack.c.b16 %v138, %v137
    %vm147 = vcmask 523264
    %v149 = vsel %vm147, %v110, 0
    %151 = vmatpush.bf16.msra.mxu0 0
    %152 = vmatpush.bf16.msra.mxu0 0
    %153 = vmatpush.bf16.msra.mxu0 0
    %154 = vmatpush.bf16.msra.mxu0 0
    %155 = vmatpush.bf16.msra.mxu0 %v142
    %156 = vmatpush.bf16.msra.mxu0 %v141
    %157 = vmatpush.bf16.msra.mxu0 %v140
    %158 = vmatpush.bf16.msra.mxu0 %v139
    %159 = vmatmul.bf16.gmra.mxu0 %v149
    %v160 = vpop.f32.mrf.mxu0
    %v161 = vadd.f32 %v121, %v160
    %v162 = vpop.f32.mrf.mxu0
    %163 = vdwg.mxu0
    %v164 = vmax.f32 %v161, 0.0
    %v165 = vpack.c.bf16 %v164, %v164
    %v166 = vld [vmem:[#allocation2] sm:$0xff]
    %v167 = vld [vmem:[#allocation2 + $0x8] sm:$0xff]
    %v168 = vld [vmem:[#allocation2 + $0x10] sm:$0xff]
    %v169 = vld [vmem:[#allocation2 + $0x18] sm:$0xff]
    %v170 = vld [vmem:[#allocation2 + $0x20] sm:$0xff]
    %v171 = vld [vmem:[#allocation2 + $0x28] sm:$0xff]
    %v172 = vld [vmem:[#allocation2 + $0x30] sm:$0xff]
    %v173 = vld [vmem:[#allocation2 + $0x38] sm:$0xff]
    %v174 = vld [vmem:[#allocation2 + $0x40] sm:$0xff]
    %v175 = vld [vmem:[#allocation2 + $0x48] sm:$0xff]
    %v176 = vld [vmem:[#allocation2 + $0x50] sm:$0xff]
    %v177 = vld [vmem:[#allocation2 + $0x58] sm:$0xff]
    %v178 = vld [vmem:[#allocation2 + $0x60] sm:$0xff]
    %v179 = vld [vmem:[#allocation2 + $0x68] sm:$0xff]
    %v180 = vld [vmem:[#allocation2 + $0x70] sm:$0xff]
    %v181 = vld [vmem:[#allocation2 + $0x78] sm:$0xff]
    %v182 = vld [vmem:[%s6] sm:$0x3]
    %v184 = vperm.slane %v182, 0
    %v185 = vperm.slane %v182, 1
    %v204 = vunpack.c.l.b16 %v166
    %v205 = vunpack.c.h.b16 %v166
    %v206 = vunpack.c.l.b16 %v167
    %v207 = vunpack.c.h.b16 %v167
    %v208 = vunpack.c.l.b16 %v168
    %v209 = vunpack.c.h.b16 %v168
    %v210 = vunpack.c.l.b16 %v169
    %v211 = vunpack.c.h.b16 %v169
    %v212 = vunpack.c.l.b16 %v170
    %v213 = vunpack.c.h.b16 %v170
    %v214 = vunpack.c.l.b16 %v171
    %v215 = vunpack.c.h.b16 %v171
    %v216 = vunpack.c.l.b16 %v172
    %v217 = vunpack.c.h.b16 %v172
    %v218 = vunpack.c.l.b16 %v173
    %v219 = vunpack.c.h.b16 %v173
    %v220 = vunpack.c.l.b16 %v174
    %v221 = vunpack.c.h.b16 %v174
    %v222 = vunpack.c.l.b16 %v175
    %v223 = vunpack.c.h.b16 %v175
    %v224 = vunpack.c.l.b16 %v176
    %v225 = vunpack.c.h.b16 %v176
    %v226 = vunpack.c.l.b16 %v177
    %v227 = vunpack.c.h.b16 %v177
    %v228 = vunpack.c.l.b16 %v178
    %v229 = vunpack.c.h.b16 %v178
    %v230 = vunpack.c.l.b16 %v179
    %v231 = vunpack.c.h.b16 %v179
    %v232 = vunpack.c.l.b16 %v180
    %v233 = vunpack.c.h.b16 %v180
    %v234 = vunpack.c.l.b16 %v181
    %v235 = vunpack.c.h.b16 %v181
    %v236 = vpack.c.b16 %v206, %v204
    %v237 = vpack.c.b16 %v207, %v205
    %v238 = vpack.c.b16 %v210, %v208
    %v239 = vpack.c.b16 %v211, %v209
    %v240 = vpack.c.b16 %v214, %v212
    %v241 = vpack.c.b16 %v215, %v213
    %v242 = vpack.c.b16 %v218, %v216
    %v243 = vpack.c.b16 %v219, %v217
    %v244 = vpack.c.b16 %v222, %v220
    %v245 = vpack.c.b16 %v223, %v221
    %v246 = vpack.c.b16 %v226, %v224
    %v247 = vpack.c.b16 %v227, %v225
    %v248 = vpack.c.b16 %v230, %v228
    %v249 = vpack.c.b16 %v231, %v229
    %v250 = vpack.c.b16 %v234, %v232
    %v251 = vpack.c.b16 %v235, %v233
    %268 = vmatpush.bf16.msra.mxu0 %v250
    %269 = vmatpush.bf16.msra.mxu0 %v248
    %270 = vmatpush.bf16.msra.mxu0 %v246
    %271 = vmatpush.bf16.msra.mxu0 %v244
    %272 = vmatpush.bf16.msra.mxu0 %v242
    %273 = vmatpush.bf16.msra.mxu0 %v240
    %274 = vmatpush.bf16.msra.mxu0 %v238
    %275 = vmatpush.bf16.msra.mxu0 %v236
    %276 = vmatmul.bf16.gmra.mxu0 %v165
    %v277 = vpop.f32.mrf.mxu0
    %v278 = vadd.f32 %v184, %v277
    %v279 = vpop.f32.mrf.mxu0
    %280 = vdwg.mxu0
    %281 = vmatpush.bf16.msra.mxu0 %v251
    %282 = vmatpush.bf16.msra.mxu0 %v249
    %283 = vmatpush.bf16.msra.mxu0 %v247
    %284 = vmatpush.bf16.msra.mxu0 %v245
    %285 = vmatpush.bf16.msra.mxu0 %v243
    %286 = vmatpush.bf16.msra.mxu0 %v241
    %287 = vmatpush.bf16.msra.mxu0 %v239
    %288 = vmatpush.bf16.msra.mxu0 %v237
    %289 = vmatmul.bf16.gmra.mxu0 %v165
    %v290 = vpop.f32.mrf.mxu0
    %v291 = vadd.f32 %v185, %v290
    %v292 = vpop.f32.mrf.mxu0
    %293 = vdwg.mxu0
    %v294 = vmax.f32 %v278, 0.0
    %v295 = vmax.f32 %v291, 0.0
    %v296 = vpack.c.bf16 %v294, %v294
    %v297 = vpack.c.bf16 %v295, %v295
    %v298 = vld [vmem:[#allocation5] sm:$0xf]
    %v299 = vld [vmem:[#allocation5 + $0x4] sm:$0xf]
    %v300 = vld [vmem:[#allocation5 + $0x8] sm:$0xf]
    %v301 = vld [vmem:[#allocation5 + $0xc] sm:$0xf]
    %v302 = vld [vmem:[#allocation5 + $0x10] sm:$0xf]
    %v303 = vld [vmem:[#allocation5 + $0x14] sm:$0xf]
    %v304 = vld [vmem:[#allocation5 + $0x18] sm:$0xf]
    %v305 = vld [vmem:[#allocation5 + $0x1c] sm:$0xf]
    %v306 = vld [vmem:[#allocation5 + $0x20] sm:$0xf]
    %v307 = vld [vmem:[#allocation5 + $0x24] sm:$0xf]
    %v308 = vld [vmem:[#allocation5 + $0x28] sm:$0xf]
    %v309 = vld [vmem:[#allocation5 + $0x2c] sm:$0xf]
    %v310 = vld [vmem:[#allocation5 + $0x30] sm:$0xf]
    %v311 = vld [vmem:[#allocation5 + $0x34] sm:$0xf]
    %v312 = vld [vmem:[#allocation5 + $0x38] sm:$0xf]
    %v313 = vld [vmem:[#allocation5 + $0x3c] sm:$0xf]
    %v314 = vld [vmem:[#allocation5 + $0x40] sm:$0xf]
    %v315 = vld [vmem:[#allocation5 + $0x44] sm:$0xf]
    %v316 = vld [vmem:[#allocation5 + $0x48] sm:$0xf]
    %v317 = vld [vmem:[#allocation5 + $0x4c] sm:$0xf]
    %v318 = vld [vmem:[#allocation5 + $0x50] sm:$0xf]
    %v319 = vld [vmem:[#allocation5 + $0x54] sm:$0xf]
    %v320 = vld [vmem:[#allocation5 + $0x58] sm:$0xf]
    %v321 = vld [vmem:[#allocation5 + $0x5c] sm:$0xf]
    %v322 = vld [vmem:[#allocation5 + $0x60] sm:$0xf]
    %v323 = vld [vmem:[#allocation5 + $0x64] sm:$0xf]
    %v324 = vld [vmem:[#allocation5 + $0x68] sm:$0xf]
    %v325 = vld [vmem:[#allocation5 + $0x6c] sm:$0xf]
    %v326 = vld [vmem:[#allocation5 + $0x70] sm:$0xf]
    %v327 = vld [vmem:[#allocation5 + $0x74] sm:$0xf]
    %v328 = vld [vmem:[#allocation5 + $0x78] sm:$0xf]
    %v329 = vld [vmem:[#allocation5 + $0x7c] sm:$0xf]
    %v330 = vld [vmem:[%s8] sm:$0x1]
    %v332 = vperm.slane %v330, 0
    %v366 = vunpack.c.l.b16 %v298
    %v367 = vunpack.c.l.b16 %v299
    %v368 = vunpack.c.l.b16 %v300
    %v369 = vunpack.c.l.b16 %v301
    %v370 = vunpack.c.l.b16 %v302
    %v371 = vunpack.c.l.b16 %v303
    %v372 = vunpack.c.l.b16 %v304
    %v373 = vunpack.c.l.b16 %v305
    %v374 = vunpack.c.l.b16 %v306
    %v375 = vunpack.c.l.b16 %v307
    %v376 = vunpack.c.l.b16 %v308
    %v377 = vunpack.c.l.b16 %v309
    %v378 = vunpack.c.l.b16 %v310
    %v379 = vunpack.c.l.b16 %v311
    %v380 = vunpack.c.l.b16 %v312
    %v381 = vunpack.c.l.b16 %v313
    %v382 = vunpack.c.l.b16 %v314
    %v383 = vunpack.c.l.b16 %v315
    %v384 = vunpack.c.l.b16 %v316
    %v385 = vunpack.c.l.b16 %v317
    %v386 = vunpack.c.l.b16 %v318
    %v387 = vunpack.c.l.b16 %v319
    %v388 = vunpack.c.l.b16 %v320
    %v389 = vunpack.c.l.b16 %v321
    %v390 = vunpack.c.l.b16 %v322
    %v391 = vunpack.c.l.b16 %v323
    %v392 = vunpack.c.l.b16 %v324
    %v393 = vunpack.c.l.b16 %v325
    %v394 = vunpack.c.l.b16 %v326
    %v395 = vunpack.c.l.b16 %v327
    %v396 = vunpack.c.l.b16 %v328
    %v397 = vunpack.c.l.b16 %v329
    %v398 = vpack.c.b16 %v367, %v366
    %v399 = vpack.c.b16 %v369, %v368
    %v400 = vpack.c.b16 %v371, %v370
    %v401 = vpack.c.b16 %v373, %v372
    %v402 = vpack.c.b16 %v375, %v374
    %v403 = vpack.c.b16 %v377, %v376
    %v404 = vpack.c.b16 %v379, %v378
    %v405 = vpack.c.b16 %v381, %v380
    %v406 = vpack.c.b16 %v383, %v382
    %v407 = vpack.c.b16 %v385, %v384
    %v408 = vpack.c.b16 %v387, %v386
    %v409 = vpack.c.b16 %v389, %v388
    %v410 = vpack.c.b16 %v391, %v390
    %v411 = vpack.c.b16 %v393, %v392
    %v412 = vpack.c.b16 %v395, %v394
    %v413 = vpack.c.b16 %v397, %v396
    %430 = vmatpush.bf16.msra.mxu0 %v405
    %431 = vmatpush.bf16.msra.mxu0 %v404
    %432 = vmatpush.bf16.msra.mxu0 %v403
    %433 = vmatpush.bf16.msra.mxu0 %v402
    %434 = vmatpush.bf16.msra.mxu0 %v401
    %435 = vmatpush.bf16.msra.mxu0 %v400
    %436 = vmatpush.bf16.msra.mxu0 %v399
    %437 = vmatpush.bf16.msra.mxu0 %v398
    %438 = vmatmul.bf16.gmra.mxu0 %v296
    %v439 = vpop.f32.mrf.mxu0
    %v440 = vadd.f32 %v332, %v439
    %v441 = vpop.f32.mrf.mxu0
    %442 = vdwg.mxu0
    %443 = vmatpush.bf16.msra.mxu0 %v413
    %444 = vmatpush.bf16.msra.mxu0 %v412
    %445 = vmatpush.bf16.msra.mxu0 %v411
    %446 = vmatpush.bf16.msra.mxu0 %v410
    %447 = vmatpush.bf16.msra.mxu0 %v409
    %448 = vmatpush.bf16.msra.mxu0 %v408
    %449 = vmatpush.bf16.msra.mxu0 %v407
    %450 = vmatpush.bf16.msra.mxu0 %v406
    %451 = vmatmul.bf16.gmra.mxu0 %v297
    %v452 = vpop.f32.mrf.mxu0
    %v453 = vadd.f32 %v440, %v452
    %v454 = vpop.f32.mrf.mxu0
    %455 = vdwg.mxu0
    %v456 = vmax.f32 %v453, 0.0
    %v457 = vpack.c.bf16 %v456, %v456
    %v458 = vld [vmem:[%s9] sm:$0xf]
    %v459 = vld [vmem:[%s9 + $0x4] sm:$0xf]
    %v460 = vld [vmem:[%s9 + $0x8] sm:$0xf]
    %v461 = vld [vmem:[%s9 + $0xc] sm:$0xf]
    %v462 = vld [vmem:[%s9 + $0x10] sm:$0xf]
    %v463 = vld [vmem:[%s9 + $0x14] sm:$0xf]
    %v464 = vld [vmem:[%s9 + $0x18] sm:$0xf]
    %v465 = vld [vmem:[%s9 + $0x1c] sm:$0xf]
    %v466 = vld [vmem:[%s9 + $0x20] sm:$0xf]
    %v467 = vld [vmem:[%s9 + $0x24] sm:$0xf]
    %v468 = vld [vmem:[%s9 + $0x28] sm:$0xf]
    %v469 = vld [vmem:[%s9 + $0x2c] sm:$0xf]
    %v470 = vld [vmem:[%s9 + $0x30] sm:$0xf]
    %v471 = vld [vmem:[%s9 + $0x34] sm:$0xf]
    %v472 = vld [vmem:[%s9 + $0x38] sm:$0xf]
    %v473 = vld [vmem:[%s9 + $0x3c] sm:$0xf]
    %v474 = vld [vmem:[%s10] sm:$0x1]
    %v476 = vperm.slane %v474, 0
    %v494 = vunpack.c.l.b16 %v458
    %v495 = vunpack.c.l.b16 %v459
    %v496 = vunpack.c.l.b16 %v460
    %v497 = vunpack.c.l.b16 %v461
    %v498 = vunpack.c.l.b16 %v462
    %v499 = vunpack.c.l.b16 %v463
    %v500 = vunpack.c.l.b16 %v464
    %v501 = vunpack.c.l.b16 %v465
    %v502 = vunpack.c.l.b16 %v466
    %v503 = vunpack.c.l.b16 %v467
    %v504 = vunpack.c.l.b16 %v468
    %v505 = vunpack.c.l.b16 %v469
    %v506 = vunpack.c.l.b16 %v470
    %v507 = vunpack.c.l.b16 %v471
    %v508 = vunpack.c.l.b16 %v472
    %v509 = vunpack.c.l.b16 %v473
    %v510 = vpack.c.b16 %v495, %v494
    %v511 = vpack.c.b16 %v497, %v496
    %v512 = vpack.c.b16 %v499, %v498
    %v513 = vpack.c.b16 %v501, %v500
    %v514 = vpack.c.b16 %v503, %v502
    %v515 = vpack.c.b16 %v505, %v504
    %v516 = vpack.c.b16 %v507, %v506
    %v517 = vpack.c.b16 %v509, %v508
    %526 = vmatpush.bf16.msra.mxu0 %v517
    %527 = vmatpush.bf16.msra.mxu0 %v516
    %528 = vmatpush.bf16.msra.mxu0 %v515
    %529 = vmatpush.bf16.msra.mxu0 %v514
    %530 = vmatpush.bf16.msra.mxu0 %v513
    %531 = vmatpush.bf16.msra.mxu0 %v512
    %532 = vmatpush.bf16.msra.mxu0 %v511
    %533 = vmatpush.bf16.msra.mxu0 %v510
    %534 = vmatmul.bf16.gmra.mxu0 %v457
    %v535 = vpop.f32.mrf.mxu0
    %v536 = vadd.f32 %v476, %v535
    %v537 = vpop.f32.mrf.mxu0
    %538 = vdwg.mxu0
    %v539 = vmax.f32 %v536, 0.0
    %v540 = vpack.c.bf16 %v539, %v539
    %v541 = vld [vmem:[%s11] sm:$0xf]
    %v542 = vld [vmem:[%s11 + $0x4] sm:$0xf]
    %v543 = vld [vmem:[%s11 + $0x8] sm:$0xf]
    %v544 = vld [vmem:[%s11 + $0xc] sm:$0xf]
    %v545 = vld [vmem:[%s11 + $0x10] sm:$0xf]
    %v546 = vld [vmem:[%s11 + $0x14] sm:$0xf]
    %v547 = vld [vmem:[%s11 + $0x18] sm:$0xf]
    %v548 = vld [vmem:[%s11 + $0x1c] sm:$0xf]
    %v549 = vld [vmem:[%s12] sm:$0x1]
    %v551 = vperm.slane %v549, 0
    %v561 = vunpack.c.l.b16 %v541
    %v562 = vunpack.c.l.b16 %v542
    %v563 = vunpack.c.l.b16 %v543
    %v564 = vunpack.c.l.b16 %v544
    %v565 = vunpack.c.l.b16 %v545
    %v566 = vunpack.c.l.b16 %v546
    %v567 = vunpack.c.l.b16 %v547
    %v568 = vunpack.c.l.b16 %v548
    %v569 = vpack.c.b16 %v562, %v561
    %v570 = vpack.c.b16 %v564, %v563
    %v571 = vpack.c.b16 %v566, %v565
    %v572 = vpack.c.b16 %v568, %v567
    %v578 = vsel %vm147, %v540, 0
    %580 = vmatpush.bf16.msra.mxu0 0
    %581 = vmatpush.bf16.msra.mxu0 0
    %582 = vmatpush.bf16.msra.mxu0 0
    %583 = vmatpush.bf16.msra.mxu0 0
    %584 = vmatpush.bf16.msra.mxu0 %v572
    %585 = vmatpush.bf16.msra.mxu0 %v571
    %586 = vmatpush.bf16.msra.mxu0 %v570
    %587 = vmatpush.bf16.msra.mxu0 %v569
    %588 = vmatmul.bf16.gmra.mxu0 %v578
    %v589 = vpop.f32.mrf.mxu0
    %v590 = vadd.f32 %v551, %v589
    %v591 = vpop.f32.mrf.mxu0
    %592 = vdwg.mxu0
    %v593 = vmax.f32 %v590, 0.0
    %594 = vst [vmem:[#allocation7] sm:$0xff] %v593
    // Predicated region
    $region62: #{tpu_custom_call.1} parent=1 // pred_check
      _
    $region63: #{tpu_custom_call.1} parent=1 // pred_check_branch
      %596 = sbr.rel (0) target = $region65
    $region64: #{tpu_custom_call.1} parent=1 // pred_region
      %598 = vsyncadd [#allocation4], 0
      %s600 = sshll.u32 [#allocation7], 4
      %s601 = int_to_ptr.vmem [resolvable:$true] %s600
      %s602 = sshll.u32 %s13, 4
      %s603 = int_to_ptr.hbm [resolvable:$true] %s602
      %605 = dma.vmem_to_hbm [thread:$0]  %s601, 128, %s603, [#allocation4]
    $region65: #{tpu_custom_call.1} parent=1 // pred_fallthru
      _
    // Predicated region
    $region66: #{tpu_custom_call.1} parent=1 // pred_check
      _
    $region67: #{tpu_custom_call.1} parent=1 // pred_check_branch
      %607 = sbr.rel (0) target = $region69
    $region68: #{tpu_custom_call.1} parent=1 // pred_region
      %609 = dma.done [#allocation4], 128
    $region69: #{tpu_custom_call.1} parent=1 // pred_fallthru
      _
    %610 = vsyncpa [#allocation3], 1
    %611 = vsyncpa [#allocation6], 1
    %612 = vsyncpa [#allocation4], 1

</llo_original>
